<compile_context>
chip_gen: v7x
topology: tpu7x:2x2x1
jax: 0.10.0
libtpu: 0.0.40
codegen_flags: <defaults>
</compile_context>

<pallas_src>
import jax
import jax.numpy as jnp
from jax import lax
from jax.experimental import pallas as pl
from jax.experimental.pallas import tpu as pltpu

_LANE = 128
_SUBLANE = 8


def _round_up(v, m):
    return ((v + m - 1) // m) * m


def _cdiv(a, b):
    return -(-a // b)


def _vmem_capacity_bytes():
    """Physical VMEM per TensorCore; falls back to the smallest deployed size (v7x, 64 MiB)."""
    try:
        info = pltpu.get_tpu_info()
        cap = int(getattr(info, "vmem_capacity_bytes", 0) or 0)
        if cap > 0:
            return cap
    except Exception:
        pass
    return 64 << 20


def _budgets():
    """(streamed-tile budget, scoped-vmem cap, physical VMEM) per TPU generation."""
    cap = _vmem_capacity_bytes()
    if cap >= (100 << 20):                       # v5e / v6e: 128 MiB VMEM per core
        return 88 << 20, 108 << 20, cap
    # v7x: 64 MiB per TensorCore -> keep headroom
    return min(40 << 20, (cap * 5) // 8), min(48 << 20, (cap * 3) // 4), cap


def _conv1d_fc_kernel(x_ref, w_ref, b_ref, o_ref):
    # x_ref: (NB, C_in, TL)  w_ref: (TCo, C_in)  b_ref: (TCo, 1)  o_ref: (NB, TCo, TL)
    w = w_ref[...]
    tco, tl = o_ref.shape[1], o_ref.shape[2]
    # Hoist the lane-broadcast of the bias out of the batch loop (JAX does not CSE it).
    bias_tile = jnp.broadcast_to(b_ref[...].astype(jnp.float32), (tco, tl))
    nb = x_ref.shape[0]

    def body(i, carry):
        acc = jnp.dot(w, x_ref[i], preferred_element_type=jnp.float32)   # MXU, (TCo, TL)
        # Activation.IDENTITY -> no elementwise epilogue (activation_par unused).
        o_ref[i] = (acc + bias_tile).astype(o_ref.dtype)
        return carry

    lax.fori_loop(0, nb, body, None, unroll=(nb <= 8))


def _choose_tiles(N, C_in, C_out, L, nbytes):
    """Pick (NB, TCo, TL) tiles + paddings so streamed (x,y) + resident (W,b) fit VMEM."""
    stream_budget, limit_cap, vmem_cap = _budgets()

    c_in_sub = _round_up(C_in, _SUBLANE)          # VMEM sublane padding of x's second-minor dim
    w_lane = _round_up(C_in, _LANE)               # VMEM lane padding of the weight's last dim

    # ---- C_out tiling: keep the single-buffered resident weight tile within budget (v7x) ----
    w_budget = max(2 << 20, limit_cap // 3)
    w_full = _round_up(C_out, _SUBLANE) * w_lane * nbytes
    tco = _round_up(_cdiv(C_out, _cdiv(w_full, w_budget)), _SUBLANE) if w_full > w_budget else C_out
    n_co = _cdiv(C_out, tco)
    c_out_pad = tco * n_co
    tco_sub = _round_up(tco, _SUBLANE)
    w_tile = tco_sub * w_lane * nbytes            # Buffered(1): one copy resident
    b_tile = tco_sub * _LANE * nbytes

    # ---- streamed x/y tile budget (double-buffered) ----
    per_col = 2 * (c_in_sub + tco_sub) * nbytes   # bytes per L-column (x + y, both double-buffered)
    stream = min(stream_budget, limit_cap - w_tile - b_tile - (4 << 20))
    stream = max(stream, per_col * _LANE)         # never below one 128-wide tile

    # ---- TL: largest lane-dense tile (multiple of 128); pad L to a multiple of it ----
    m = _cdiv(L, _LANE)                           # length in 128-lane columns
    tl_cap_grp = max(1, (stream // per_col) // _LANE)
    steps_l = _cdiv(m, tl_cap_grp)
    tl = _LANE * _cdiv(m, steps_l)
    l_pad = tl * steps_l

    # ---- NB: fold batches per grid step (amortize ~0.35us/step); pad N if needed ----
    per_batch = per_col * tl
    max_nb = 32 if steps_l == 1 else 8            # whole-L tiles are contiguous -> grow NB more
    nb_cap = max(1, min(max_nb, stream // per_batch, N))
    steps_n = _cdiv(N, nb_cap)
    nb = _cdiv(N, steps_n)
    n_pad = nb * steps_n

    # ---- guarantee >= 2 grid steps so v7x can shard the work across its 2 TensorCores ----
    if n_co * steps_n * steps_l == 1:
        if N >= 2:
            steps_n, nb = 2, _cdiv(N, 2)
            n_pad = nb * steps_n
        elif m >= 2:
            steps_l = 2
            tl = _LANE * _cdiv(m, 2)
            l_pad = tl * steps_l
        elif C_out >= 2 * _SUBLANE:
            tco = _round_up(_cdiv(C_out, 2), _SUBLANE)
            n_co = _cdiv(C_out, tco)
            c_out_pad = tco * n_co
            tco_sub = _round_up(tco, _SUBLANE)
            w_tile = tco_sub * w_lane * nbytes
            b_tile = tco_sub * _LANE * nbytes

    # vmem_limit must cover what we actually allocate (plus headroom) and never exceed physical.
    needed = 2 * nb * (c_in_sub + tco_sub) * tl * nbytes + w_tile + b_tile
    vmem_limit = int(min(vmem_cap, max(needed + (4 << 20), limit_cap)))
    return dict(nb=nb, n_pad=n_pad, steps_n=steps_n,
                tco=tco, n_co=n_co, c_out_pad=c_out_pad,
                tl=tl, l_pad=l_pad, steps_l=steps_l,
                vmem_limit=vmem_limit)


def conv1d_fc_layer(x, weight, bias, *, stream_dtype=None):
    """Conv1dFCLayer forward: y[n] = W @ x[n] + b  (kernel_size=1 Conv1d, identity activation).

    x: (N, C_in, L); weight: (C_out, C_in) (squeezed Conv1d weight); bias: (C_out,).
    stream_dtype: optional narrower dtype (e.g. jnp.bfloat16) for streaming x / W; f32
      accumulation is kept and the output is returned in x.dtype.
    """
    N, C_in, L = x.shape
    C_out = weight.shape[0]
    out_dtype = x.dtype
    compute_dtype = jnp.dtype(stream_dtype) if stream_dtype is not None else jnp.dtype(x.dtype)
    nbytes = compute_dtype.itemsize

    t = _choose_tiles(N, C_in, C_out, L, nbytes)
    nb, n_pad, steps_n = t["nb"], t["n_pad"], t["steps_n"]
    tco, n_co, c_out_pad = t["tco"], t["n_co"], t["c_out_pad"]
    tl, l_pad, steps_l = t["tl"], t["l_pad"], t["steps_l"]

    x_p = x.astype(compute_dtype)
    if (n_pad, l_pad) != (N, L):
        x_p = jnp.pad(x_p, ((0, n_pad - N), (0, 0), (0, l_pad - L)))
    w_p = weight.astype(compute_dtype)
    b_p = bias.reshape(C_out, 1).astype(jnp.float32)
    if c_out_pad != C_out:
        w_p = jnp.pad(w_p, ((0, c_out_pad - C_out), (0, 0)))
        b_p = jnp.pad(b_p, ((0, c_out_pad - C_out), (0, 0)))

    cost = pl.CostEstimate(
        flops=2 * n_pad * c_out_pad * C_in * l_pad,
        bytes_accessed=(n_pad * C_in * l_pad * nbytes
                        + n_co * c_out_pad * C_in * nbytes
                        + c_out_pad * 4
                        + n_pad * c_out_pad * l_pad * jnp.dtype(out_dtype).itemsize),
        transcendentals=0,
    )

    def make_call(single_buffer_resident):
        # Resident weight/bias never change within a C_out tile -> single-buffer them.
        resident_kw = {"pipeline_mode": pl.Buffered(1)} if single_buffer_resident else {}
        return pl.pallas_call(
            _conv1d_fc_kernel,
            out_shape=jax.ShapeDtypeStruct((n_pad, c_out_pad, l_pad), out_dtype),
            grid_spec=pltpu.PrefetchScalarGridSpec(
                num_scalar_prefetch=0,
                grid=(n_co, steps_n, steps_l),                                    # (co, n, l)
                in_specs=[
                    pl.BlockSpec((nb, C_in, tl), lambda co, n, l: (n, 0, l)),     # streamed x
                    pl.BlockSpec((tco, C_in), lambda co, n, l: (co, 0), **resident_kw),   # weight
                    pl.BlockSpec((tco, 1), lambda co, n, l: (co, 0), **resident_kw),      # bias
                ],
                out_specs=pl.BlockSpec((nb, tco, tl), lambda co, n, l: (n, co, l)),
            ),
            compiler_params=pltpu.CompilerParams(
                dimension_semantics=("parallel", "parallel", "parallel"),
                vmem_limit_bytes=t["vmem_limit"],
            ),
            cost_estimate=cost,
        )

    try:
        y = make_call(True)(x_p, w_p, b_p)
    except Exception:
        # TODO(synk): drop this fallback once pl.Buffered(1) resident BlockSpecs are
        # guaranteed on every deployed JAX/Mosaic version.
        y = make_call(False)(x_p, w_p, b_p)

    if (n_pad, c_out_pad, l_pad) != (N, C_out, L):
        y = y[:N, :C_out, :L]
    return y


def init_conv1d_fc_params(key, in_features, out_features):
    """Matches Conv1dFCLayer.reset_parameters: xavier_uniform_ weight, zero bias.

    Conv1d weight shape is (C_out, C_in, 1); with kernel_size=1 we store (C_out, C_in).
    Xavier-uniform bound = sqrt(6 / (fan_in + fan_out)).
    """
    bound = (6.0 / (in_features + out_features)) ** 0.5
    weight = jax.random.uniform(
        key, (out_features, in_features), dtype=jnp.float32, minval=-bound, maxval=bound
    )
    bias = jnp.zeros((out_features,), dtype=jnp.float32)
    return weight, bias


def _snap_bf16(a):
    # Snap test inputs onto the bf16 grid so the check is insensitive to the MXU's
    # f32-matmul precision mode (bf16-pass vs multi-pass): all paths then agree to ~1e-7.
    return a.astype(jnp.bfloat16).astype(jnp.float32)


if __name__ == "__main__":
    key = jax.random.PRNGKey(0)
    k_x, k_w, k_b, k_x3, k_w3, k_b3 = jax.random.split(key, 6)

    # Case 1: module defaults (zero bias), small NCL input.
    N, C_in, C_out, L = 2, 4, 8, 16
    x = _snap_bf16(jax.random.normal(k_x, (N, C_in, L), dtype=jnp.float32))
    weight, bias = init_conv1d_fc_params(k_w, C_in, C_out)
    weight = _snap_bf16(weight)
    y = conv1d_fc_layer(x, weight, bias)
    jax.block_until_ready(y)
    y_ref = jnp.einsum("oc,ncl->nol", weight, x) + bias[None, :, None]
    assert y.shape == (N, C_out, L)
    assert jnp.allclose(y, y_ref, atol=1e-4, rtol=1e-4)

    # Case 2: nonzero bias.
    bias2 = _snap_bf16(jax.random.normal(k_b, (C_out,), dtype=jnp.float32))
    y2 = conv1d_fc_layer(x, weight, bias2)
    jax.block_until_ready(y2)
    y2_ref = jnp.einsum("oc,ncl->nol", weight, x) + bias2[None, :, None]
    assert jnp.allclose(y2, y2_ref, atol=1e-4, rtol=1e-4)

    # Case 3: awkward shapes (no nice divisors) exercising N / L padding + multi-step grid.
    N3, C_in3, C_out3, L3 = 3, 5, 12, 200
    x3 = _snap_bf16(jax.random.normal(k_x3, (N3, C_in3, L3), dtype=jnp.float32))
    w3, _ = init_conv1d_fc_params(k_w3, C_in3, C_out3)
    w3 = _snap_bf16(w3)
    b3 = _snap_bf16(jax.random.normal(k_b3, (C_out3,), dtype=jnp.float32))
    y3 = conv1d_fc_layer(x3, w3, b3)
    jax.block_until_ready(y3)
    y3_ref = jnp.einsum("oc,ncl->nol", w3, x3) + b3[None, :, None]
    assert y3.shape == (N3, C_out3, L3)
    assert jnp.allclose(y3, y3_ref, atol=1e-4, rtol=1e-4)

    # Case 4: optional bf16 streaming (halves HBM traffic; f32 accumulation, f32 output).
    y4 = conv1d_fc_layer(x, weight, bias2, stream_dtype=jnp.bfloat16)
    jax.block_until_ready(y4)
    assert jnp.allclose(y4, y2_ref, atol=1e-3, rtol=1e-3)

    print("KERNEL_OK")
</pallas_src>

<mosaic_0001>
module attributes {stable_mosaic.version = 11 : i64} {
  func.func @_conv1d_fc_kernel(%arg0: i32, %arg1: i32, %arg2: i32, %arg3: memref<1x4x128xf32, #tpu.memory_space<vmem>>, %arg4: memref<8x4xf32, #tpu.memory_space<vmem>>, %arg5: memref<8x1xf32, #tpu.memory_space<vmem>>, %arg6: memref<1x8x128xf32, #tpu.memory_space<vmem>>) attributes {dimension_semantics = [#tpu.dimension_semantics<parallel>, #tpu.dimension_semantics<parallel>, #tpu.dimension_semantics<parallel>], iteration_bounds = array<i64: 1, 2, 1>, scalar_prefetch = 0 : i64, scratch_operands = 0 : i64, tpu.core_type = #tpu.core_type<tc>, window_params = [{transform_indices = @transform_0, window_bounds = array<i64: 1, 4, 128>}, {pipeline_mode = #tpu.pipeline_mode<synchronous>, transform_indices = @transform_1, window_bounds = array<i64: 8, 4>}, {pipeline_mode = #tpu.pipeline_mode<synchronous>, transform_indices = @transform_2, window_bounds = array<i64: 8, 1>}, {transform_indices = @transform_3, window_bounds = array<i64: 1, 8, 128>}]} {
    %c0 = arith.constant 0 : index
    %c0_0 = arith.constant 0 : index
    %0 = vector.load %arg4[%c0, %c0_0] : memref<8x4xf32, #tpu.memory_space<vmem>>, vector<8x4xf32>
    %c0_1 = arith.constant 0 : index
    %c0_2 = arith.constant 0 : index
    %1 = vector.load %arg5[%c0_1, %c0_2] : memref<8x1xf32, #tpu.memory_space<vmem>>, vector<8x1xf32>
    %2 = vector.shape_cast %1 : vector<8x1xf32> to vector<8x1xf32>
    %3 = vector.broadcast %2 : vector<8x1xf32> to vector<8x128xf32>
    %c0_i32 = arith.constant 0 : i32
    %4 = arith.index_cast %c0_i32 : i32 to index
    %c0_3 = arith.constant 0 : index
    %c0_4 = arith.constant 0 : index
    %5 = vector.load %arg3[%4, %c0_3, %c0_4] : memref<1x4x128xf32, #tpu.memory_space<vmem>>, vector<1x4x128xf32>
    %6 = vector.shape_cast %5 : vector<1x4x128xf32> to vector<4x128xf32>
    %cst = arith.constant dense<0.000000e+00> : vector<8x128xf32>
    %7 = tpu.matmul %0, %6, %cst {dimension_numbers = #tpu.dot_dimension_numbers<[1], [0], [0], [1], [0, 0, 1, 1], [], []>} : vector<8x4xf32>, vector<4x128xf32>, vector<8x128xf32> -> vector<8x128xf32>
    %8 = arith.addf %7, %3 : vector<8x128xf32>
    %9 = arith.index_cast %c0_i32 : i32 to index
    %c0_5 = arith.constant 0 : index
    %c0_6 = arith.constant 0 : index
    %10 = vector.load %arg6[%9, %c0_5, %c0_6] : memref<1x8x128xf32, #tpu.memory_space<vmem>>, vector<1x8x128xf32>
    %11 = vector.shape_cast %10 : vector<1x8x128xf32> to vector<8x128xf32>
    %12 = vector.shape_cast %8 : vector<8x128xf32> to vector<1x8x128xf32>
    tpu.vector_store %arg6[%9, %c0_5, %c0_6], %12 {strides = array<i32>} : memref<1x8x128xf32, #tpu.memory_space<vmem>>, vector<1x8x128xf32>,
    %c1_i32 = arith.constant 1 : i32
    return
  }
  func.func @transform_0(%arg0: i32, %arg1: i32, %arg2: i32) -> (i32, i32, i32) {
    %c0_i32 = arith.constant 0 : i32
    %c0_i32_0 = arith.constant 0 : i32
    return %arg1, %c0_i32, %arg2 : i32, i32, i32
  }
  func.func @transform_1(%arg0: i32, %arg1: i32, %arg2: i32) -> (i32, i32) {
    %c0_i32 = arith.constant 0 : i32
    %c0_i32_0 = arith.constant 0 : i32
    return %arg0, %c0_i32 : i32, i32
  }
  func.func @transform_2(%arg0: i32, %arg1: i32, %arg2: i32) -> (i32, i32) {
    %c0_i32 = arith.constant 0 : i32
    %c0_i32_0 = arith.constant 0 : i32
    return %arg0, %c0_i32 : i32, i32
  }
  func.func @transform_3(%arg0: i32, %arg1: i32, %arg2: i32) -> (i32, i32, i32) {
    %c0_i32 = arith.constant 0 : i32
    return %arg1, %arg0, %arg2 : i32, i32, i32
  }
}

module attributes {stable_mosaic.version = 11 : i64} {
  func.func @_conv1d_fc_kernel(%arg0: i32, %arg1: i32, %arg2: i32, %arg3: memref<1x4x128xf32, #tpu.memory_space<vmem>>, %arg4: memref<8x4xf32, #tpu.memory_space<vmem>>, %arg5: memref<8x1xf32, #tpu.memory_space<vmem>>, %arg6: memref<1x8x128xf32, #tpu.memory_space<vmem>>) attributes {dimension_semantics = [#tpu.dimension_semantics<parallel>, #tpu.dimension_semantics<parallel>, #tpu.dimension_semantics<parallel>], iteration_bounds = array<i64: 1, 2, 1>, scalar_prefetch = 0 : i64, scratch_operands = 0 : i64, tpu.core_type = #tpu.core_type<tc>, window_params = [{transform_indices = @transform_0, window_bounds = array<i64: 1, 4, 128>}, {transform_indices = @transform_1, window_bounds = array<i64: 8, 4>}, {transform_indices = @transform_2, window_bounds = array<i64: 8, 1>}, {transform_indices = @transform_3, window_bounds = array<i64: 1, 8, 128>}]} {
    %c0 = arith.constant 0 : index
    %c0_0 = arith.constant 0 : index
    %0 = vector.load %arg4[%c0, %c0_0] : memref<8x4xf32, #tpu.memory_space<vmem>>, vector<8x4xf32>
    %c0_1 = arith.constant 0 : index
    %c0_2 = arith.constant 0 : index
    %1 = vector.load %arg5[%c0_1, %c0_2] : memref<8x1xf32, #tpu.memory_space<vmem>>, vector<8x1xf32>
    %2 = vector.shape_cast %1 : vector<8x1xf32> to vector<8x1xf32>
    %3 = vector.broadcast %2 : vector<8x1xf32> to vector<8x128xf32>
    %c0_i32 = arith.constant 0 : i32
    %4 = arith.index_cast %c0_i32 : i32 to index
    %c0_3 = arith.constant 0 : index
    %c0_4 = arith.constant 0 : index
    %5 = vector.load %arg3[%4, %c0_3, %c0_4] : memref<1x4x128xf32, #tpu.memory_space<vmem>>, vector<1x4x128xf32>
    %6 = vector.shape_cast %5 : vector<1x4x128xf32> to vector<4x128xf32>
    %cst = arith.constant dense<0.000000e+00> : vector<8x128xf32>
    %7 = tpu.matmul %0, %6, %cst {dimension_numbers = #tpu.dot_dimension_numbers<[1], [0], [0], [1], [0, 0, 1, 1], [], []>} : vector<8x4xf32>, vector<4x128xf32>, vector<8x128xf32> -> vector<8x128xf32>
    %8 = arith.addf %7, %3 : vector<8x128xf32>
    %9 = arith.index_cast %c0_i32 : i32 to index
    %c0_5 = arith.constant 0 : index
    %c0_6 = arith.constant 0 : index
    %10 = vector.load %arg6[%9, %c0_5, %c0_6] : memref<1x8x128xf32, #tpu.memory_space<vmem>>, vector<1x8x128xf32>
    %11 = vector.shape_cast %10 : vector<1x8x128xf32> to vector<8x128xf32>
    %12 = vector.shape_cast %8 : vector<8x128xf32> to vector<1x8x128xf32>
    tpu.vector_store %arg6[%9, %c0_5, %c0_6], %12 {strides = array<i32>} : memref<1x8x128xf32, #tpu.memory_space<vmem>>, vector<1x8x128xf32>,
    %c1_i32 = arith.constant 1 : i32
    return
  }
  func.func @transform_0(%arg0: i32, %arg1: i32, %arg2: i32) -> (i32, i32, i32) {
    %c0_i32 = arith.constant 0 : i32
    %c0_i32_0 = arith.constant 0 : i32
    return %arg1, %c0_i32, %arg2 : i32, i32, i32
  }
  func.func @transform_1(%arg0: i32, %arg1: i32, %arg2: i32) -> (i32, i32) {
    %c0_i32 = arith.constant 0 : i32
    %c0_i32_0 = arith.constant 0 : i32
    return %arg0, %c0_i32 : i32, i32
  }
  func.func @transform_2(%arg0: i32, %arg1: i32, %arg2: i32) -> (i32, i32) {
    %c0_i32 = arith.constant 0 : i32
    %c0_i32_0 = arith.constant 0 : i32
    return %arg0, %c0_i32 : i32, i32
  }
  func.func @transform_3(%arg0: i32, %arg1: i32, %arg2: i32) -> (i32, i32, i32) {
    %c0_i32 = arith.constant 0 : i32
    return %arg1, %arg0, %arg2 : i32, i32, i32
  }
}

</mosaic_0001>

<llo_original>
// kernel: tpu_custom_call.1
$region0: #{tpu_custom_call.1}
  #allocation0 [shape = 'u32[]', space=smem, size = 0x4, offset = 0x4, fixed_abs, tag = 'smem constant byte address 0x4 - core index']
  #allocation1 [shape = 'u32[144,128]{1,0:T(1,128)}', space=vmem, size = 0x12000, scoped, tag = 'internal scratch']
  %s0 = inlined_call_operand.vmem [shape: f32[2,4,128], index: 0, kind: input, shape index: {}]
  %s1 = inlined_call_operand.vmem [shape: f32[8,4], index: 1, kind: input, shape index: {}]
  %s2 = inlined_call_operand.vmem [shape: f32[8,1], index: 2, kind: input, shape index: {}]
  %s3 = inlined_call_operand.hbm [shape: f32[2,8,128], index: 3, kind: output, shape index: {}]
  %s4 = sld [smem:[#allocation0]]
  $region45: #{tpu_custom_call.1} parent=0
    _
  %s6 = ssub.s32 1, %s4
  %s7 = scalar_select 0, %s6, %s4
  $region1: #{tpu_custom_call.1} parent=0
    #allocation2 [shape = 'u8[8192]{0}', space=vmem, size = 0x2000, scoped, tag = 'output window, operand 0']
    #allocation3 [shape = 's32[2]{0}', space=sflag, size = 0x8, scoped, tag = 'scoped memory for tpu_custom_call.1']
    %8 = vsyncpa [#allocation3], 0
    %s9 = scalar_lea.sflag [#allocation3], 1
    %10 = vsyncpa %s9, 0
    loop: start=0, step=1, limit=4
    $region2: #{tpu_custom_call.1} parent=1 // loop_pre_header
      _
    $region3: #{tpu_custom_call.1} parent=1 // loop_header
      %s12 = sphi 0, %s16
      %p13 = scmp.ge.s32.totalorder %s12, 4
      %s19 = sphi 0, %s38
      %s20 = sphi 0, %s34
      %s21 = sphi 0, %s30
      %s22 = sphi 0, %s19
      %s23 = sphi 0, %s20
      %s24 = sphi 0, %s21
      %s25 = sphi 0, %s22
      %s26 = sphi 0, %s23
      %s27 = sphi 0, %s24
      %s43 = sphi 0, %s45
      %s46 = sphi 0, %s43
      %s47 = sphi 0, %s46
      %s63 = sphi 0, %s47
      %s69 = sphi 0, %s71
      %s72 = sphi 0, %s69
      %s73 = sphi 0, %s72
      %s89 = sphi 0, %s73
      %s95 = sphi 0, %s97
      %s98 = sphi 0, %s95
      %s99 = sphi 0, %s98
      %s115 = sphi 0, %s99
      %s125 = sphi 0, %s127
      %s128 = sphi 0, %s125
      %s129 = sphi 0, %s128
      %s145 = sphi 0, %s129
    $region4: #{tpu_custom_call.1} parent=1 // loop_header_branch
      %15 = sbr.rel (%p13) target = $region8
    $region5: #{tpu_custom_call.1} parent=1 // loop_body
      %s17 = ssub.s32 %s12, 1
      %s18 = ssub.s32 %s12, 2
      %s28 = sadd.s32 1, %s21
      %p29 = scmp.ge.s32.totalorder %s28, 1
      %s30 = scalar_select %p29, 0, %s28
      %s31 = sadd.s32 1, %s20
      %s32 = scalar_select %p29, %s31, %s20
      %p33 = scmp.ge.s32.totalorder %s32, 2
      %s34 = scalar_select %p33, 0, %s32
      %s35 = sadd.s32 1, %s19
      %s36 = scalar_select %p33, %s35, %s19
      %p37 = scmp.ge.s32.totalorder %s36, 1
      %s38 = scalar_select %p37, 0, %s36
      %s39 = ssub.s32 %s20, %s34
      %s40 = ssub.s32 %s21, %s30
      %s41 = sor.u32 %s39, %s40
      %p42 = scmp.eq.s32.totalorder %s41, 0
      %s44 = sadd.s32 %s43, 1
      %s45 = scalar_select %p42, %s43, %s44
      %p48 = pneg %p42
      %p49 = scmp.eq.s32.totalorder %s12, 1
      %p50 = por %p48, %p49
      %p51 = scmp.ne.s32.totalorder %s43, %s46
      %p52 = scmp.eq.s32.totalorder %s12, 0
      %p53 = por %p51, %p52
      %p54 = scmp.ne.s32.totalorder %s43, %s46
      %p55 = scmp.eq.s32.totalorder %s17, 1
      %p56 = por %p54, %p55
      %p57 = scmp.ne.s32.totalorder %s46, %s47
      %p58 = scmp.eq.s32.totalorder %s17, 0
      %p59 = por %p57, %p58
      %p60 = scmp.ne.s32.totalorder %s46, %s47
      %p61 = scmp.eq.s32.totalorder %s18, 1
      %p62 = por %p60, %p61
      %p64 = scmp.ne.s32.totalorder %s47, %s63
      %p65 = scmp.eq.s32.totalorder %s18, 0
      %p66 = por %p64, %p65
      %s67 = ssub.s32 %s19, %s38
      %p68 = scmp.eq.s32.totalorder %s67, 0
      %s70 = sadd.s32 %s69, 1
      %s71 = scalar_select %p68, %s69, %s70
      %p74 = pneg %p68
      %p75 = scmp.eq.s32.totalorder %s12, 1
      %p76 = por %p74, %p75
      %p77 = scmp.ne.s32.totalorder %s69, %s72
      %p78 = scmp.eq.s32.totalorder %s12, 0
      %p79 = por %p77, %p78
      %p80 = scmp.ne.s32.totalorder %s69, %s72
      %p81 = scmp.eq.s32.totalorder %s17, 1
      %p82 = por %p80, %p81
      %p83 = scmp.ne.s32.totalorder %s72, %s73
      %p84 = scmp.eq.s32.totalorder %s17, 0
      %p85 = por %p83, %p84
      %p86 = scmp.ne.s32.totalorder %s72, %s73
      %p87 = scmp.eq.s32.totalorder %s18, 1
      %p88 = por %p86, %p87
      %p90 = scmp.ne.s32.totalorder %s73, %s89
      %p91 = scmp.eq.s32.totalorder %s18, 0
      %p92 = por %p90, %p91
      %s93 = ssub.s32 %s19, %s38
      %p94 = scmp.eq.s32.totalorder %s93, 0
      %s96 = sadd.s32 %s95, 1
      %s97 = scalar_select %p94, %s95, %s96
      %p100 = pneg %p94
      %p101 = scmp.eq.s32.totalorder %s12, 1
      %p102 = por %p100, %p101
      %p103 = scmp.ne.s32.totalorder %s95, %s98
      %p104 = scmp.eq.s32.totalorder %s12, 0
      %p105 = por %p103, %p104
      %p106 = scmp.ne.s32.totalorder %s95, %s98
      %p107 = scmp.eq.s32.totalorder %s17, 1
      %p108 = por %p106, %p107
      %p109 = scmp.ne.s32.totalorder %s98, %s99
      %p110 = scmp.eq.s32.totalorder %s17, 0
      %p111 = por %p109, %p110
      %p112 = scmp.ne.s32.totalorder %s98, %s99
      %p113 = scmp.eq.s32.totalorder %s18, 1
      %p114 = por %p112, %p113
      %p116 = scmp.ne.s32.totalorder %s99, %s115
      %p117 = scmp.eq.s32.totalorder %s18, 0
      %p118 = por %p116, %p117
      %s119 = ssub.s32 %s20, %s34
      %s120 = ssub.s32 %s19, %s38
      %s121 = sor.u32 %s119, %s120
      %s122 = ssub.s32 %s21, %s30
      %s123 = sor.u32 %s121, %s122
      %p124 = scmp.eq.s32.totalorder %s123, 0
      %s126 = sadd.s32 %s125, 1
      %s127 = scalar_select %p124, %s125, %s126
      %p130 = pneg %p124
      %p131 = scmp.eq.s32.totalorder %s12, 1
      %p132 = por %p130, %p131
      %p133 = scmp.ne.s32.totalorder %s125, %s128
      %p134 = scmp.eq.s32.totalorder %s12, 0
      %p135 = por %p133, %p134
      %p136 = scmp.ne.s32.totalorder %s125, %s128
      %p137 = scmp.eq.s32.totalorder %s17, 1
      %p138 = por %p136, %p137
      %p139 = scmp.ne.s32.totalorder %s128, %s129
      %p140 = scmp.eq.s32.totalorder %s17, 0
      %p141 = por %p139, %p140
      %p142 = scmp.ne.s32.totalorder %s128, %s129
      %p143 = scmp.eq.s32.totalorder %s18, 1
      %p144 = por %p142, %p143
      %p146 = scmp.ne.s32.totalorder %s129, %s145
      %p147 = scmp.eq.s32.totalorder %s18, 0
      %p148 = por %p146, %p147
      %p149 = scmp.le.s32.totalorder 1, %s12
      %p150 = scmp.lt.s32.totalorder %s12, 3
      %p151 = pnand %p149, %p150
      %p152 = pneg %p151
      // Predicated region
      $region9: #{tpu_custom_call.1} parent=5 // pred_check
        _
      $region10: #{tpu_custom_call.1} parent=5 // pred_check_branch
        %154 = sbr.rel (%p151) target = $region12
      $region11: #{tpu_custom_call.1} parent=5 // pred_region
        %s155 = ssub.s32 %s12, 1
        // Predicated region
        $region13: #{tpu_custom_call.1} parent=11 // pred_check
          %p156 = pneg %p85
        $region14: #{tpu_custom_call.1} parent=11 // pred_check_branch
          %158 = sbr.rel (%p156) target = $region16
        $region15: #{tpu_custom_call.1} parent=11 // pred_region
          %p159 = scmp.lt.s32.totalorder %s22, 0
          %s160 = scalar_select %p159, %s22, 0
          %s161 = smul.addr %s160, 8
          %s162 = scalar_lea.vmem %s1, %s161
        $region16: #{tpu_custom_call.1} parent=11 // pred_fallthru
          _
        // Predicated region
        $region17: #{tpu_custom_call.1} parent=11 // pred_check
          %p163 = pneg %p111
        $region18: #{tpu_custom_call.1} parent=11 // pred_check_branch
          %165 = sbr.rel (%p163) target = $region20
        $region19: #{tpu_custom_call.1} parent=11 // pred_region
          %p166 = scmp.lt.s32.totalorder %s22, 0
          %s167 = scalar_select %p166, %s22, 0
          %s168 = smul.addr %s167, 8
          %s169 = scalar_lea.vmem %s2, %s168
        $region20: #{tpu_custom_call.1} parent=11 // pred_fallthru
          _
      $region12: #{tpu_custom_call.1} parent=5 // pred_fallthru
        _
      %p170 = scmp.lt.s32.totalorder %s12, 2
      // Predicated region
      $region21: #{tpu_custom_call.1} parent=5 // pred_check
        %p171 = pneg %p170
      $region22: #{tpu_custom_call.1} parent=5 // pred_check_branch
        %173 = sbr.rel (%p171) target = $region24
      $region23: #{tpu_custom_call.1} parent=5 // pred_region
        // Predicated region
        $region25: #{tpu_custom_call.1} parent=23 // pred_check
          %p174 = pneg %p53
        $region26: #{tpu_custom_call.1} parent=23 // pred_check_branch
          %176 = sbr.rel (%p174) target = $region28
        $region27: #{tpu_custom_call.1} parent=23 // pred_region
          %p177 = scmp.lt.s32.totalorder %s20, 1
          %s178 = scalar_select %p177, %s20, 1
          %p179 = scmp.lt.s32.totalorder %s21, 0
          %s180 = scalar_select %p179, %s21, 0
          %s181 = sadd.s32 %s180, %s178
          %s182 = smul.addr %s181, 4
          %s183 = scalar_lea.vmem %s0, %s182
        $region28: #{tpu_custom_call.1} parent=23 // pred_fallthru
          _
      $region24: #{tpu_custom_call.1} parent=5 // pred_fallthru
        _
      %p184 = scmp.le.s32.totalorder 1, %s12
      %p185 = scmp.lt.s32.totalorder %s12, 3
      %p186 = pnand %p184, %p185
      %p187 = pneg %p186
      // Predicated region
      $region29: #{tpu_custom_call.1} parent=5 // pred_check
        _
      $region30: #{tpu_custom_call.1} parent=5 // pred_check_branch
        %189 = sbr.rel (%p186) target = $region32
      $region31: #{tpu_custom_call.1} parent=5 // pred_region
        %s190 = ssub.s32 %s12, 1
        %p191 = scmp.lt.s32.totalorder %s23, 1
        %s192 = scalar_select %p191, %s23, 1
        %p193 = scmp.lt.s32.totalorder %s24, 0
        %s194 = scalar_select %p193, %s24, 0
        %s195 = sadd.s32 %s194, %s192
        %s196 = smul.addr %s195, 4
        %s197 = scalar_lea.vmem %s0, %s196
        %p198 = pneg %p59
        %p199 = pneg %p56
        %p200 = scmp.lt.s32.totalorder %s22, 0
        %s201 = scalar_select %p200, %s22, 0
        %s202 = smul.addr %s201, 8
        %s203 = scalar_lea.vmem %s1, %s202
        %p204 = pneg %p85
        %p205 = pneg %p82
        %p206 = scmp.lt.s32.totalorder %s22, 0
        %s207 = scalar_select %p206, %s22, 0
        %s208 = smul.addr %s207, 8
        %s209 = scalar_lea.vmem %s2, %s208
        %p210 = pneg %p111
        %p211 = pneg %p108
        %p212 = pneg %p141
        %p213 = pneg %p138
        %s214 = sand.u32 %s128, 1
        %s215 = scalar_lea.sflag [#allocation3], %s214
        %s216 = sand.u32 %s128, 1
        %s217 = smul.addr %s216, 8
        %s218 = scalar_lea.vmem [#allocation2], %s217
        %p219 = scmp.lt.s32.totalorder %s23, 1
        %s220 = scalar_select %p219, %s23, 1
        %p221 = scmp.lt.s32.totalorder %s24, 0
        %s222 = scalar_select %p221, %s24, 0
        %s223 = sadd.s32 %s222, %s220
        %s224 = smul.addr %s223, 4
        %s225 = scalar_lea.vmem %s0, %s224
        %p226 = scmp.lt.s32.totalorder %s22, 0
        %s227 = scalar_select %p226, %s22, 0
        %s228 = smul.addr %s227, 8
        %s229 = scalar_lea.vmem %s1, %s228
        %p230 = scmp.lt.s32.totalorder %s22, 0
        %s231 = scalar_select %p230, %s22, 0
        %s232 = smul.addr %s231, 8
        %s233 = scalar_lea.vmem %s2, %s232
        %v234 = vld [vmem:[%s229] sm:$0xff]
        %v235 = vld [vmem:[%s233] sm:$0xff]
        %237 = vset.pattern.permute.xlu0 0
        %238 = vperm.xlu0 %237, %v235
        %v239 = vpop.permute.xlu0 %238
        %v241 = vld [vmem:[%s225] sm:$0xf]
        %vm242 = vcmask 31744
        %v244 = vsel %vm242, %v234, 0
        %vm246 = vcmask 1043456
        %v248 = vsel %vm246, %v241, 0
        %250 = vmatprep.subr.mxu0 0.0
        %251 = vmatpush1.msra.mxu0 %v248
        %252 = vmatprep.subr.mxu0 0.0
        %253 = vmatpush1.msra.mxu0 0.0
        %254 = vmatprep.subr.mxu0 0.0
        %255 = vmatpush1.msra.mxu0 0.0
        %256 = vmatprep.subr.mxu0 0.0
        %257 = vmatpush1.msra.mxu0 0.0
        %258 = vmatprep.subr.mxu0 0.0
        %259 = vmatpush1.msra.mxu0 0.0
        %260 = vmatprep.subr.mxu0 0.0
        %261 = vmatpush1.msra.mxu0 0.0
        %262 = vmatprep.subr.mxu0 0.0
        %263 = vmatpush1.msra.mxu0 0.0
        %264 = vmatprep.subr.mxu0 0.0
        %265 = vmatpush1.msra.mxu0 0.0
        %266 = vmatprep.subr.mxu0 0.0
        %267 = vmatpush1.msra.mxu0 0.0
        %268 = vmatprep.subr.mxu0 0.0
        %269 = vmatpush1.msra.mxu0 0.0
        %270 = vmatprep.subr.mxu0 0.0
        %271 = vmatpush1.msra.mxu0 0.0
        %272 = vmatprep.subr.mxu0 0.0
        %273 = vmatpush1.msra.mxu0 0.0
        %274 = vmatprep.subr.mxu0 0.0
        %275 = vmatpush1.msra.mxu0 0.0
        %276 = vmatprep.subr.mxu0 0.0
        %277 = vmatpush1.msra.mxu0 0.0
        %278 = vmatprep.subr.mxu0 0.0
        %279 = vmatpush1.msra.mxu0 0.0
        %280 = vmatprep.subr.mxu0 0.0
        %281 = vmatpush1.msra.mxu0 0.0
        %282 = vmatprep.subr.mxu0 0.0
        %283 = vmatpush1.msra.mxu0 0.0
        %284 = vmatprep.subr.mxu0 0.0
        %285 = vmatpush1.msra.mxu0 0.0
        %286 = vmatprep.subr.mxu0 0.0
        %287 = vmatpush1.msra.mxu0 0.0
        %288 = vmatprep.subr.mxu0 0.0
        %289 = vmatpush1.msra.mxu0 0.0
        %290 = vmatprep.subr.mxu0 0.0
        %291 = vmatpush1.msra.mxu0 0.0
        %292 = vmatprep.subr.mxu0 0.0
        %293 = vmatpush1.msra.mxu0 0.0
        %294 = vmatprep.subr.mxu0 0.0
        %295 = vmatpush1.msra.mxu0 0.0
        %296 = vmatprep.subr.mxu0 0.0
        %297 = vmatpush1.msra.mxu0 0.0
        %298 = vmatprep.subr.mxu0 0.0
        %299 = vmatpush1.msra.mxu0 0.0
        %300 = vmatprep.subr.mxu0 0.0
        %301 = vmatpush1.msra.mxu0 0.0
        %302 = vmatprep.subr.mxu0 0.0
        %303 = vmatpush1.msra.mxu0 0.0
        %304 = vmatprep.subr.mxu0 0.0
        %305 = vmatpush1.msra.mxu0 0.0
        %306 = vmatprep.subr.mxu0 0.0
        %307 = vmatpush1.msra.mxu0 0.0
        %308 = vmatprep.subr.mxu0 0.0
        %309 = vmatpush1.msra.mxu0 0.0
        %310 = vmatprep.subr.mxu0 0.0
        %311 = vmatpush1.msra.mxu0 0.0
        %312 = vmatprep.subr.mxu0 0.0
        %313 = vmatpush1.msra.mxu0 0.0
        %314 = vmatprep.mubr.f32.mxu0 0.0
        %315 = vmatmul.mubr.f32.gmra.mrb[0].mxu0 %v244
        %v316 = vpop.f32.mrb[0].mxu0
        %v317 = vadd.f32 %v239, %v316
        %v318 = vpop.f32.mrb[0].mxu0
        %319 = vdwg.mxu0
        %320 = vst [vmem:[%s218] sm:$0xff] %v317
        %s321 = sand.u32 %s128, 1
        %s322 = scalar_lea.sflag [#allocation3], %s321
        %s323 = sand.u32 %s128, 1
        %s324 = smul.addr %s323, 8
        %s325 = scalar_lea.vmem [#allocation2], %s324
        // Predicated region
        $region33: #{tpu_custom_call.1} parent=31 // pred_check
          %p326 = pneg %p138
        $region34: #{tpu_custom_call.1} parent=31 // pred_check_branch
          %328 = sbr.rel (%p326) target = $region36
        $region35: #{tpu_custom_call.1} parent=31 // pred_region
          %s330 = ssub.s32 128, 128
          %331 = vsyncadd %s322, %s330
          %s332 = sadd.s32 %s24, %s22
          %s333 = sadd.s32 %s332, %s23
          %s334 = smul.addr %s333, 128
          %s335 = scalar_lea.hbm %s3, %s334
          %s337 = sshll.u32 %s325, 4
          %s338 = int_to_ptr.vmem [resolvable:$true] %s337
          %340 = dma.vmem_to_hbm [thread:$0]  %s338, 128, %s335, %s322
        $region36: #{tpu_custom_call.1} parent=31 // pred_fallthru
          _
      $region32: #{tpu_custom_call.1} parent=5 // pred_fallthru
        _
      %p341 = scmp.le.s32.totalorder 2, %s12
      // Predicated region
      $region37: #{tpu_custom_call.1} parent=5 // pred_check
        %p342 = pneg %p341
      $region38: #{tpu_custom_call.1} parent=5 // pred_check_branch
        %344 = sbr.rel (%p342) target = $region40
      $region39: #{tpu_custom_call.1} parent=5 // pred_region
        %s345 = ssub.s32 %s12, 2
        // Predicated region
        $region41: #{tpu_custom_call.1} parent=39 // pred_check
          %p346 = pneg %p144
        $region42: #{tpu_custom_call.1} parent=39 // pred_check_branch
          %348 = sbr.rel (%p346) target = $region44
        $region43: #{tpu_custom_call.1} parent=39 // pred_region
          %s349 = sand.u32 %s129, 1
          %s350 = scalar_lea.sflag [#allocation3], %s349
          %s351 = sand.u32 %s129, 1
          %s352 = smul.addr %s351, 8
          %s353 = scalar_lea.vmem [#allocation2], %s352
          %354 = dma.done %s350, 128
        $region44: #{tpu_custom_call.1} parent=39 // pred_fallthru
          _
      $region40: #{tpu_custom_call.1} parent=5 // pred_fallthru
        _
    $region6: #{tpu_custom_call.1} parent=1 // loop_footer
      %s16 = sadd.s32 1, %s12
    $region7: #{tpu_custom_call.1} parent=1 // loop_footer_branch
      %11 = sbr.rel target = $region3
    $region8: #{tpu_custom_call.1} parent=1 // loop_exit
      _
    %355 = vsyncpa [#allocation3], 1
    %s356 = scalar_lea.sflag [#allocation3], 1
    %357 = vsyncpa %s356, 1

// kernel: tpu_custom_call.1
$region0: #{tpu_custom_call.1}
  #allocation0 [shape = 'u32[]', space=smem, size = 0x4, offset = 0x4, fixed_abs, tag = 'smem constant byte address 0x4 - core index']
  #allocation1 [shape = 'u32[144,128]{1,0:T(1,128)}', space=vmem, size = 0x12000, scoped, tag = 'internal scratch']
  %s0 = inlined_call_operand.vmem [shape: f32[2,4,128], index: 0, kind: input, shape index: {}]
  %s1 = inlined_call_operand.vmem [shape: f32[8,4], index: 1, kind: input, shape index: {}]
  %s2 = inlined_call_operand.vmem [shape: f32[8,1], index: 2, kind: input, shape index: {}]
  %s3 = inlined_call_operand.hbm [shape: f32[2,8,128], index: 3, kind: output, shape index: {}]
  %s4 = sld [smem:[#allocation0]]
  $region45: #{tpu_custom_call.1} parent=0
    _
  %s6 = ssub.s32 1, %s4
  %s7 = scalar_select 0, %s6, %s4
  $region1: #{tpu_custom_call.1} parent=0
    #allocation2 [shape = 'u8[8192]{0}', space=vmem, size = 0x2000, scoped, tag = 'output window, operand 0']
    #allocation3 [shape = 's32[2]{0}', space=sflag, size = 0x8, scoped, tag = 'scoped memory for tpu_custom_call.1']
    %8 = vsyncpa [#allocation3], 0
    %s9 = scalar_lea.sflag [#allocation3], 1
    %10 = vsyncpa %s9, 0
    loop: start=0, step=1, limit=4
    $region2: #{tpu_custom_call.1} parent=1 // loop_pre_header
      _
    $region3: #{tpu_custom_call.1} parent=1 // loop_header
      %s12 = sphi 0, %s16
      %p13 = scmp.ge.s32.totalorder %s12, 4
      %s19 = sphi 0, %s38
      %s20 = sphi 0, %s34
      %s21 = sphi 0, %s30
      %s22 = sphi 0, %s19
      %s23 = sphi 0, %s20
      %s24 = sphi 0, %s21
      %s25 = sphi 0, %s22
      %s26 = sphi 0, %s23
      %s27 = sphi 0, %s24
      %s43 = sphi 0, %s45
      %s46 = sphi 0, %s43
      %s47 = sphi 0, %s46
      %s63 = sphi 0, %s47
      %s69 = sphi 0, %s71
      %s72 = sphi 0, %s69
      %s73 = sphi 0, %s72
      %s89 = sphi 0, %s73
      %s95 = sphi 0, %s97
      %s98 = sphi 0, %s95
      %s99 = sphi 0, %s98
      %s115 = sphi 0, %s99
      %s125 = sphi 0, %s127
      %s128 = sphi 0, %s125
      %s129 = sphi 0, %s128
      %s145 = sphi 0, %s129
    $region4: #{tpu_custom_call.1} parent=1 // loop_header_branch
      %15 = sbr.rel (%p13) target = $region8
    $region5: #{tpu_custom_call.1} parent=1 // loop_body
      %s17 = ssub.s32 %s12, 1
      %s18 = ssub.s32 %s12, 2
      %s28 = sadd.s32 1, %s21
      %p29 = scmp.ge.s32.totalorder %s28, 1
      %s30 = scalar_select %p29, 0, %s28
      %s31 = sadd.s32 1, %s20
      %s32 = scalar_select %p29, %s31, %s20
      %p33 = scmp.ge.s32.totalorder %s32, 2
      %s34 = scalar_select %p33, 0, %s32
      %s35 = sadd.s32 1, %s19
      %s36 = scalar_select %p33, %s35, %s19
      %p37 = scmp.ge.s32.totalorder %s36, 1
      %s38 = scalar_select %p37, 0, %s36
      %s39 = ssub.s32 %s20, %s34
      %s40 = ssub.s32 %s21, %s30
      %s41 = sor.u32 %s39, %s40
      %p42 = scmp.eq.s32.totalorder %s41, 0
      %s44 = sadd.s32 %s43, 1
      %s45 = scalar_select %p42, %s43, %s44
      %p48 = pneg %p42
      %p49 = scmp.eq.s32.totalorder %s12, 1
      %p50 = por %p48, %p49
      %p51 = scmp.ne.s32.totalorder %s43, %s46
      %p52 = scmp.eq.s32.totalorder %s12, 0
      %p53 = por %p51, %p52
      %p54 = scmp.ne.s32.totalorder %s43, %s46
      %p55 = scmp.eq.s32.totalorder %s17, 1
      %p56 = por %p54, %p55
      %p57 = scmp.ne.s32.totalorder %s46, %s47
      %p58 = scmp.eq.s32.totalorder %s17, 0
      %p59 = por %p57, %p58
      %p60 = scmp.ne.s32.totalorder %s46, %s47
      %p61 = scmp.eq.s32.totalorder %s18, 1
      %p62 = por %p60, %p61
      %p64 = scmp.ne.s32.totalorder %s47, %s63
      %p65 = scmp.eq.s32.totalorder %s18, 0
      %p66 = por %p64, %p65
      %s67 = ssub.s32 %s19, %s38
      %p68 = scmp.eq.s32.totalorder %s67, 0
      %s70 = sadd.s32 %s69, 1
      %s71 = scalar_select %p68, %s69, %s70
      %p74 = pneg %p68
      %p75 = scmp.eq.s32.totalorder %s12, 1
      %p76 = por %p74, %p75
      %p77 = scmp.ne.s32.totalorder %s69, %s72
      %p78 = scmp.eq.s32.totalorder %s12, 0
      %p79 = por %p77, %p78
      %p80 = scmp.ne.s32.totalorder %s69, %s72
      %p81 = scmp.eq.s32.totalorder %s17, 1
      %p82 = por %p80, %p81
      %p83 = scmp.ne.s32.totalorder %s72, %s73
      %p84 = scmp.eq.s32.totalorder %s17, 0
      %p85 = por %p83, %p84
      %p86 = scmp.ne.s32.totalorder %s72, %s73
      %p87 = scmp.eq.s32.totalorder %s18, 1
      %p88 = por %p86, %p87
      %p90 = scmp.ne.s32.totalorder %s73, %s89
      %p91 = scmp.eq.s32.totalorder %s18, 0
      %p92 = por %p90, %p91
      %s93 = ssub.s32 %s19, %s38
      %p94 = scmp.eq.s32.totalorder %s93, 0
      %s96 = sadd.s32 %s95, 1
      %s97 = scalar_select %p94, %s95, %s96
      %p100 = pneg %p94
      %p101 = scmp.eq.s32.totalorder %s12, 1
      %p102 = por %p100, %p101
      %p103 = scmp.ne.s32.totalorder %s95, %s98
      %p104 = scmp.eq.s32.totalorder %s12, 0
      %p105 = por %p103, %p104
      %p106 = scmp.ne.s32.totalorder %s95, %s98
      %p107 = scmp.eq.s32.totalorder %s17, 1
      %p108 = por %p106, %p107
      %p109 = scmp.ne.s32.totalorder %s98, %s99
      %p110 = scmp.eq.s32.totalorder %s17, 0
      %p111 = por %p109, %p110
      %p112 = scmp.ne.s32.totalorder %s98, %s99
      %p113 = scmp.eq.s32.totalorder %s18, 1
      %p114 = por %p112, %p113
      %p116 = scmp.ne.s32.totalorder %s99, %s115
      %p117 = scmp.eq.s32.totalorder %s18, 0
      %p118 = por %p116, %p117
      %s119 = ssub.s32 %s20, %s34
      %s120 = ssub.s32 %s19, %s38
      %s121 = sor.u32 %s119, %s120
      %s122 = ssub.s32 %s21, %s30
      %s123 = sor.u32 %s121, %s122
      %p124 = scmp.eq.s32.totalorder %s123, 0
      %s126 = sadd.s32 %s125, 1
      %s127 = scalar_select %p124, %s125, %s126
      %p130 = pneg %p124
      %p131 = scmp.eq.s32.totalorder %s12, 1
      %p132 = por %p130, %p131
      %p133 = scmp.ne.s32.totalorder %s125, %s128
      %p134 = scmp.eq.s32.totalorder %s12, 0
      %p135 = por %p133, %p134
      %p136 = scmp.ne.s32.totalorder %s125, %s128
      %p137 = scmp.eq.s32.totalorder %s17, 1
      %p138 = por %p136, %p137
      %p139 = scmp.ne.s32.totalorder %s128, %s129
      %p140 = scmp.eq.s32.totalorder %s17, 0
      %p141 = por %p139, %p140
      %p142 = scmp.ne.s32.totalorder %s128, %s129
      %p143 = scmp.eq.s32.totalorder %s18, 1
      %p144 = por %p142, %p143
      %p146 = scmp.ne.s32.totalorder %s129, %s145
      %p147 = scmp.eq.s32.totalorder %s18, 0
      %p148 = por %p146, %p147
      %p149 = scmp.le.s32.totalorder 1, %s12
      %p150 = scmp.lt.s32.totalorder %s12, 3
      %p151 = pnand %p149, %p150
      %p152 = pneg %p151
      // Predicated region
      $region9: #{tpu_custom_call.1} parent=5 // pred_check
        _
      $region10: #{tpu_custom_call.1} parent=5 // pred_check_branch
        %154 = sbr.rel (%p151) target = $region12
      $region11: #{tpu_custom_call.1} parent=5 // pred_region
        %s155 = ssub.s32 %s12, 1
        // Predicated region
        $region13: #{tpu_custom_call.1} parent=11 // pred_check
          %p156 = pneg %p85
        $region14: #{tpu_custom_call.1} parent=11 // pred_check_branch
          %158 = sbr.rel (%p156) target = $region16
        $region15: #{tpu_custom_call.1} parent=11 // pred_region
          %p159 = scmp.lt.s32.totalorder %s22, 0
          %s160 = scalar_select %p159, %s22, 0
          %s161 = smul.addr %s160, 8
          %s162 = scalar_lea.vmem %s1, %s161
        $region16: #{tpu_custom_call.1} parent=11 // pred_fallthru
          _
        // Predicated region
        $region17: #{tpu_custom_call.1} parent=11 // pred_check
          %p163 = pneg %p111
        $region18: #{tpu_custom_call.1} parent=11 // pred_check_branch
          %165 = sbr.rel (%p163) target = $region20
        $region19: #{tpu_custom_call.1} parent=11 // pred_region
          %p166 = scmp.lt.s32.totalorder %s22, 0
          %s167 = scalar_select %p166, %s22, 0
          %s168 = smul.addr %s167, 8
          %s169 = scalar_lea.vmem %s2, %s168
        $region20: #{tpu_custom_call.1} parent=11 // pred_fallthru
          _
      $region12: #{tpu_custom_call.1} parent=5 // pred_fallthru
        _
      %p170 = scmp.lt.s32.totalorder %s12, 2
      // Predicated region
      $region21: #{tpu_custom_call.1} parent=5 // pred_check
        %p171 = pneg %p170
      $region22: #{tpu_custom_call.1} parent=5 // pred_check_branch
        %173 = sbr.rel (%p171) target = $region24
      $region23: #{tpu_custom_call.1} parent=5 // pred_region
        // Predicated region
        $region25: #{tpu_custom_call.1} parent=23 // pred_check
          %p174 = pneg %p53
        $region26: #{tpu_custom_call.1} parent=23 // pred_check_branch
          %176 = sbr.rel (%p174) target = $region28
        $region27: #{tpu_custom_call.1} parent=23 // pred_region
          %p177 = scmp.lt.s32.totalorder %s20, 1
          %s178 = scalar_select %p177, %s20, 1
          %p179 = scmp.lt.s32.totalorder %s21, 0
          %s180 = scalar_select %p179, %s21, 0
          %s181 = sadd.s32 %s180, %s178
          %s182 = smul.addr %s181, 4
          %s183 = scalar_lea.vmem %s0, %s182
        $region28: #{tpu_custom_call.1} parent=23 // pred_fallthru
          _
      $region24: #{tpu_custom_call.1} parent=5 // pred_fallthru
        _
      %p184 = scmp.le.s32.totalorder 1, %s12
      %p185 = scmp.lt.s32.totalorder %s12, 3
      %p186 = pnand %p184, %p185
      %p187 = pneg %p186
      // Predicated region
      $region29: #{tpu_custom_call.1} parent=5 // pred_check
        _
      $region30: #{tpu_custom_call.1} parent=5 // pred_check_branch
        %189 = sbr.rel (%p186) target = $region32
      $region31: #{tpu_custom_call.1} parent=5 // pred_region
        %s190 = ssub.s32 %s12, 1
        %p191 = scmp.lt.s32.totalorder %s23, 1
        %s192 = scalar_select %p191, %s23, 1
        %p193 = scmp.lt.s32.totalorder %s24, 0
        %s194 = scalar_select %p193, %s24, 0
        %s195 = sadd.s32 %s194, %s192
        %s196 = smul.addr %s195, 4
        %s197 = scalar_lea.vmem %s0, %s196
        %p198 = pneg %p59
        %p199 = pneg %p56
        %p200 = scmp.lt.s32.totalorder %s22, 0
        %s201 = scalar_select %p200, %s22, 0
        %s202 = smul.addr %s201, 8
        %s203 = scalar_lea.vmem %s1, %s202
        %p204 = pneg %p85
        %p205 = pneg %p82
        %p206 = scmp.lt.s32.totalorder %s22, 0
        %s207 = scalar_select %p206, %s22, 0
        %s208 = smul.addr %s207, 8
        %s209 = scalar_lea.vmem %s2, %s208
        %p210 = pneg %p111
        %p211 = pneg %p108
        %p212 = pneg %p141
        %p213 = pneg %p138
        %s214 = sand.u32 %s128, 1
        %s215 = scalar_lea.sflag [#allocation3], %s214
        %s216 = sand.u32 %s128, 1
        %s217 = smul.addr %s216, 8
        %s218 = scalar_lea.vmem [#allocation2], %s217
        %p219 = scmp.lt.s32.totalorder %s23, 1
        %s220 = scalar_select %p219, %s23, 1
        %p221 = scmp.lt.s32.totalorder %s24, 0
        %s222 = scalar_select %p221, %s24, 0
        %s223 = sadd.s32 %s222, %s220
        %s224 = smul.addr %s223, 4
        %s225 = scalar_lea.vmem %s0, %s224
        %p226 = scmp.lt.s32.totalorder %s22, 0
        %s227 = scalar_select %p226, %s22, 0
        %s228 = smul.addr %s227, 8
        %s229 = scalar_lea.vmem %s1, %s228
        %p230 = scmp.lt.s32.totalorder %s22, 0
        %s231 = scalar_select %p230, %s22, 0
        %s232 = smul.addr %s231, 8
        %s233 = scalar_lea.vmem %s2, %s232
        %v234 = vld [vmem:[%s229] sm:$0xff]
        %v235 = vld [vmem:[%s233] sm:$0xff]
        %237 = vset.pattern.permute.xlu0 0
        %238 = vperm.xlu0 %237, %v235
        %v239 = vpop.permute.xlu0 %238
        %v241 = vld [vmem:[%s225] sm:$0xf]
        %vm242 = vcmask 31744
        %v244 = vsel %vm242, %v234, 0
        %vm246 = vcmask 1043456
        %v248 = vsel %vm246, %v241, 0
        %250 = vmatprep.subr.mxu0 0.0
        %251 = vmatpush1.msra.mxu0 %v248
        %252 = vmatprep.subr.mxu0 0.0
        %253 = vmatpush1.msra.mxu0 0.0
        %254 = vmatprep.subr.mxu0 0.0
        %255 = vmatpush1.msra.mxu0 0.0
        %256 = vmatprep.subr.mxu0 0.0
        %257 = vmatpush1.msra.mxu0 0.0
        %258 = vmatprep.subr.mxu0 0.0
        %259 = vmatpush1.msra.mxu0 0.0
        %260 = vmatprep.subr.mxu0 0.0
        %261 = vmatpush1.msra.mxu0 0.0
        %262 = vmatprep.subr.mxu0 0.0
        %263 = vmatpush1.msra.mxu0 0.0
        %264 = vmatprep.subr.mxu0 0.0
        %265 = vmatpush1.msra.mxu0 0.0
        %266 = vmatprep.subr.mxu0 0.0
        %267 = vmatpush1.msra.mxu0 0.0
        %268 = vmatprep.subr.mxu0 0.0
        %269 = vmatpush1.msra.mxu0 0.0
        %270 = vmatprep.subr.mxu0 0.0
        %271 = vmatpush1.msra.mxu0 0.0
        %272 = vmatprep.subr.mxu0 0.0
        %273 = vmatpush1.msra.mxu0 0.0
        %274 = vmatprep.subr.mxu0 0.0
        %275 = vmatpush1.msra.mxu0 0.0
        %276 = vmatprep.subr.mxu0 0.0
        %277 = vmatpush1.msra.mxu0 0.0
        %278 = vmatprep.subr.mxu0 0.0
        %279 = vmatpush1.msra.mxu0 0.0
        %280 = vmatprep.subr.mxu0 0.0
        %281 = vmatpush1.msra.mxu0 0.0
        %282 = vmatprep.subr.mxu0 0.0
        %283 = vmatpush1.msra.mxu0 0.0
        %284 = vmatprep.subr.mxu0 0.0
        %285 = vmatpush1.msra.mxu0 0.0
        %286 = vmatprep.subr.mxu0 0.0
        %287 = vmatpush1.msra.mxu0 0.0
        %288 = vmatprep.subr.mxu0 0.0
        %289 = vmatpush1.msra.mxu0 0.0
        %290 = vmatprep.subr.mxu0 0.0
        %291 = vmatpush1.msra.mxu0 0.0
        %292 = vmatprep.subr.mxu0 0.0
        %293 = vmatpush1.msra.mxu0 0.0
        %294 = vmatprep.subr.mxu0 0.0
        %295 = vmatpush1.msra.mxu0 0.0
        %296 = vmatprep.subr.mxu0 0.0
        %297 = vmatpush1.msra.mxu0 0.0
        %298 = vmatprep.subr.mxu0 0.0
        %299 = vmatpush1.msra.mxu0 0.0
        %300 = vmatprep.subr.mxu0 0.0
        %301 = vmatpush1.msra.mxu0 0.0
        %302 = vmatprep.subr.mxu0 0.0
        %303 = vmatpush1.msra.mxu0 0.0
        %304 = vmatprep.subr.mxu0 0.0
        %305 = vmatpush1.msra.mxu0 0.0
        %306 = vmatprep.subr.mxu0 0.0
        %307 = vmatpush1.msra.mxu0 0.0
        %308 = vmatprep.subr.mxu0 0.0
        %309 = vmatpush1.msra.mxu0 0.0
        %310 = vmatprep.subr.mxu0 0.0
        %311 = vmatpush1.msra.mxu0 0.0
        %312 = vmatprep.subr.mxu0 0.0
        %313 = vmatpush1.msra.mxu0 0.0
        %314 = vmatprep.mubr.f32.mxu0 0.0
        %315 = vmatmul.mubr.f32.gmra.mrb[0].mxu0 %v244
        %v316 = vpop.f32.mrb[0].mxu0
        %v317 = vadd.f32 %v239, %v316
        %v318 = vpop.f32.mrb[0].mxu0
        %319 = vdwg.mxu0
        %320 = vst [vmem:[%s218] sm:$0xff] %v317
        %s321 = sand.u32 %s128, 1
        %s322 = scalar_lea.sflag [#allocation3], %s321
        %s323 = sand.u32 %s128, 1
        %s324 = smul.addr %s323, 8
        %s325 = scalar_lea.vmem [#allocation2], %s324
        // Predicated region
        $region33: #{tpu_custom_call.1} parent=31 // pred_check
          %p326 = pneg %p138
        $region34: #{tpu_custom_call.1} parent=31 // pred_check_branch
          %328 = sbr.rel (%p326) target = $region36
        $region35: #{tpu_custom_call.1} parent=31 // pred_region
          %s330 = ssub.s32 128, 128
          %331 = vsyncadd %s322, %s330
          %s332 = sadd.s32 %s24, %s22
          %s333 = sadd.s32 %s332, %s23
          %s334 = smul.addr %s333, 128
          %s335 = scalar_lea.hbm %s3, %s334
          %s337 = sshll.u32 %s325, 4
          %s338 = int_to_ptr.vmem [resolvable:$true] %s337
          %340 = dma.vmem_to_hbm [thread:$0]  %s338, 128, %s335, %s322
        $region36: #{tpu_custom_call.1} parent=31 // pred_fallthru
          _
      $region32: #{tpu_custom_call.1} parent=5 // pred_fallthru
        _
      %p341 = scmp.le.s32.totalorder 2, %s12
      // Predicated region
      $region37: #{tpu_custom_call.1} parent=5 // pred_check
        %p342 = pneg %p341
      $region38: #{tpu_custom_call.1} parent=5 // pred_check_branch
        %344 = sbr.rel (%p342) target = $region40
      $region39: #{tpu_custom_call.1} parent=5 // pred_region
        %s345 = ssub.s32 %s12, 2
        // Predicated region
        $region41: #{tpu_custom_call.1} parent=39 // pred_check
          %p346 = pneg %p144
        $region42: #{tpu_custom_call.1} parent=39 // pred_check_branch
          %348 = sbr.rel (%p346) target = $region44
        $region43: #{tpu_custom_call.1} parent=39 // pred_region
          %s349 = sand.u32 %s129, 1
          %s350 = scalar_lea.sflag [#allocation3], %s349
          %s351 = sand.u32 %s129, 1
          %s352 = smul.addr %s351, 8
          %s353 = scalar_lea.vmem [#allocation2], %s352
          %354 = dma.done %s350, 128
        $region44: #{tpu_custom_call.1} parent=39 // pred_fallthru
          _
      $region40: #{tpu_custom_call.1} parent=5 // pred_fallthru
        _
    $region6: #{tpu_custom_call.1} parent=1 // loop_footer
      %s16 = sadd.s32 1, %s12
    $region7: #{tpu_custom_call.1} parent=1 // loop_footer_branch
      %11 = sbr.rel target = $region3
    $region8: #{tpu_custom_call.1} parent=1 // loop_exit
      _
    %355 = vsyncpa [#allocation3], 1
    %s356 = scalar_lea.sflag [#allocation3], 1
    %357 = vsyncpa %s356, 1

</llo_original>
